<compile_context>
chip_gen: v7x
topology: tpu7x:2x2x1
jax: 0.10.0
libtpu: 0.0.40
codegen_flags: <defaults>
</compile_context>

<pallas_src>
import functools

import jax
import jax.numpy as jnp
from jax import lax
from jax.experimental import pallas as pl
from jax.experimental.pallas import tpu as pltpu


def _round_up(a: int, b: int) -> int:
    return (a + b - 1) // b * b


def _ls_ce_kernel(x_ref, tgt_ref, out_ref, *,
                  smoothing: float, n_true: int, tile_n: int, n_classes: int):
    confidence = 1.0 - smoothing
    w_hi = confidence + smoothing / n_classes   # weight on the target class
    w_lo = smoothing / n_classes                # weight on every other class
    pid = pl.program_id(0)

    x = x_ref[...].astype(jnp.float32)          # (tile_n, C) upcast per tile
    tgt = tgt_ref[...]                          # (tile_n, 1) int32

    # Closed-form per-row loss with a fused weighted reduction:
    #   loss_i = (m_i + lse_i) - sum_c w_{i,c} * x_{i,c}
    m = jnp.max(x, axis=-1, keepdims=True)                            # (tile_n, 1)
    lse = jnp.log(jnp.sum(jnp.exp(x - m), axis=-1, keepdims=True))    # (tile_n, 1)
    col = lax.broadcasted_iota(jnp.int32, (tile_n, n_classes), 1)
    w = jnp.where(col == tgt, w_hi, w_lo)                             # (tile_n, C)
    wsum = jnp.sum(w * x, axis=-1, keepdims=True)                     # (tile_n, 1)
    loss = (m + lse) - wsum                                           # (tile_n, 1)

    # Mask rows past the true N (ragged last block reads undefined data).
    # Select, never multiply: garbage rows may hold inf/NaN.
    row = pid * tile_n + lax.broadcasted_iota(jnp.int32, (tile_n, 1), 0)
    loss = jnp.where(row < n_true, loss, 0.0)

    # Per-tile partial sum -> this tile's own lane-dense (1, 8, 128) block.
    tile_sum = jnp.sum(loss, axis=0, keepdims=True)                   # (1, 1)
    out_ref[...] = jnp.broadcast_to(tile_sum.reshape(1, 1, 1), (1, 8, 128))


def label_smoothing_cross_entropy(x: jax.Array, target: jax.Array,
                                  smoothing: float = 0.1,
                                  tile_n: int | None = None) -> jax.Array:
    """x: (N, C) float32/bfloat16; target: (N,) int. Returns scalar f32 loss."""
    assert smoothing < 1.0
    n, c = x.shape
    itemsize = jnp.dtype(x.dtype).itemsize

    # Per-row VMEM footprint model:
    #   2 * C * itemsize   double-buffered x tile
    #   4 * C * 4          f32 in-kernel temporaries (upcast, exp, where, w*x)
    #   2 * 128 * 4        lane-padded (tile_n, 1) int32 target, double-buffered
    bytes_per_row = 2 * c * itemsize + 4 * c * 4 + 2 * 128 * 4
    if tile_n is None:
        # ~36 MiB total-footprint budget: fits v7x's 64 MiB VMEM with headroom,
        # gives multi-MiB input tiles on v5e/v6e (85%+ of HBM roofline).
        tile_n = (36 << 20) // bytes_per_row
    tile_n = max(8, min(int(tile_n), _round_up(n, 8)))
    tile_n = max(8, (tile_n // 8) * 8)

    num_tiles = pl.cdiv(n, tile_n)
    tgt2d = target.astype(jnp.int32).reshape(n, 1)

    kernel = functools.partial(_ls_ce_kernel, smoothing=float(smoothing),
                               n_true=n, tile_n=tile_n, n_classes=c)

    vmem_bytes = tile_n * bytes_per_row + 2 * 8 * 128 * 4 + (4 << 20)
    vmem_limit = int(min(max(vmem_bytes, 16 << 20), 48 << 20))

    cost = pl.CostEstimate(
        flops=6 * n * c,
        transcendentals=n * c,                        # the exp (plus n logs)
        bytes_accessed=n * c * itemsize + n * 4 + num_tiles * 8 * 128 * 4,
    )

    partials = pl.pallas_call(
        kernel,
        out_shape=jax.ShapeDtypeStruct((num_tiles, 8, 128), jnp.float32),
        grid_spec=pltpu.PrefetchScalarGridSpec(
            num_scalar_prefetch=0,
            grid=(num_tiles,),
            in_specs=[
                pl.BlockSpec((tile_n, c), lambda i: (i, 0)),
                pl.BlockSpec((tile_n, 1), lambda i: (i, 0)),
            ],
            # Each grid step owns its (1, 8, 128) block -> no carried state,
            # so the N axis can shard across TensorCores on v7x.
            out_specs=pl.BlockSpec((1, 8, 128), lambda i: (i, 0, 0)),
        ),
        compiler_params=pltpu.CompilerParams(
            dimension_semantics=("parallel",),
            vmem_limit_bytes=vmem_limit,
        ),
        cost_estimate=cost,
    )(x, tgt2d)

    # Tiny final reduce in XLA (num_tiles * 4 KiB of HBM), then the mean.
    return jnp.sum(partials[:, 0, 0]) / n


def _reference(x, target, smoothing=0.1):
    confidence = 1.0 - smoothing
    logprobs = jax.nn.log_softmax(x.astype(jnp.float32), axis=-1)
    nll = -jnp.take_along_axis(logprobs, target[:, None], axis=-1)[:, 0]
    smooth = -jnp.mean(logprobs, axis=-1)
    return jnp.mean(confidence * nll + smoothing * smooth)


if __name__ == "__main__":
    key = jax.random.PRNGKey(0)
    kx, kt, kx2, kt2 = jax.random.split(key, 4)

    # Case 1: explicit small tile -> multi-tile grid (3 tiles) with a ragged
    # last tile and no wrapper padding; exercises the masking + parallel path.
    N, C = 20, 32
    x = jax.random.normal(kx, (N, C), dtype=jnp.float32)
    target = jax.random.randint(kt, (N,), 0, C, dtype=jnp.int32)
    loss = jax.block_until_ready(
        label_smoothing_cross_entropy(x, target, smoothing=0.1, tile_n=8))
    ref = _reference(x, target, smoothing=0.1)
    assert jnp.allclose(loss, ref, rtol=1e-5, atol=1e-5), (loss, ref)

    # Case 2: auto tile sizing (single ragged block covering all rows).
    N2, C2 = 300, 160
    x2 = jax.random.normal(kx2, (N2, C2), dtype=jnp.float32)
    target2 = jax.random.randint(kt2, (N2,), 0, C2, dtype=jnp.int32)
    loss2 = jax.block_until_ready(
        label_smoothing_cross_entropy(x2, target2, smoothing=0.1))
    ref2 = _reference(x2, target2, smoothing=0.1)
    assert jnp.allclose(loss2, ref2, rtol=1e-5, atol=1e-5), (loss2, ref2)

    print("KERNEL_OK")
</pallas_src>

<mosaic_0001>
module attributes {stable_mosaic.version = 11 : i64} {
  func.func @_ls_ce_kernel(%arg0: i32, %arg1: memref<8x32xf32, #tpu.memory_space<vmem>>, %arg2: memref<8x1xi32, #tpu.memory_space<vmem>>, %arg3: memref<1x8x128xf32, #tpu.memory_space<vmem>>) attributes {dimension_semantics = [#tpu.dimension_semantics<parallel>], iteration_bounds = array<i64: 3>, scalar_prefetch = 0 : i64, scratch_operands = 0 : i64, tpu.core_type = #tpu.core_type<tc>, window_params = [{transform_indices = @transform_0, window_bounds = array<i64: 8, 32>}, {transform_indices = @transform_1, window_bounds = array<i64: 8, 1>}, {transform_indices = @transform_2, window_bounds = array<i64: 1, 8, 128>}]} {
    %c0 = arith.constant 0 : index
    %c0_0 = arith.constant 0 : index
    %0 = vector.load %arg1[%c0, %c0_0] : memref<8x32xf32, #tpu.memory_space<vmem>>, vector<8x32xf32>
    %c0_1 = arith.constant 0 : index
    %c0_2 = arith.constant 0 : index
    %1 = vector.load %arg2[%c0_1, %c0_2] : memref<8x1xi32, #tpu.memory_space<vmem>>, vector<8x1xi32>
    %cst = arith.constant dense<0xFF800000> : vector<8xf32>
    %2 = vector.multi_reduction <maximumf>, %0, %cst [1] : vector<8x32xf32> to vector<8xf32>
    %3 = vector.shape_cast %2 : vector<8xf32> to vector<8x1xf32>
    %4 = vector.broadcast %3 : vector<8x1xf32> to vector<8x32xf32>
    %5 = arith.subf %0, %4 : vector<8x32xf32>
    %6 = math.exp %5 : vector<8x32xf32>
    %cst_3 = arith.constant dense<0.000000e+00> : vector<8xf32>
    %7 = vector.multi_reduction <add>, %6, %cst_3 [1] : vector<8x32xf32> to vector<8xf32>
    %8 = vector.shape_cast %7 : vector<8xf32> to vector<8x1xf32>
    %9 = math.log %8 : vector<8x1xf32>
    %10 = tpu.iota {dimensions = array<i32: 1>} : vector<8x32xi32>
    %11 = vector.broadcast %1 : vector<8x1xi32> to vector<8x32xi32>
    %12 = arith.cmpi eq, %10, %11 : vector<8x32xi32>
    %cst_4 = arith.constant 0.903124988 : f32
    %cst_5 = arith.constant 3.125000e-03 : f32
    %13 = vector.broadcast %cst_4 : f32 to vector<8x32xf32>
    %14 = vector.broadcast %cst_5 : f32 to vector<8x32xf32>
    %15 = arith.select %12, %13, %14 : vector<8x32xi1>, vector<8x32xf32>
    %16 = arith.mulf %15, %0 : vector<8x32xf32>
    %cst_6 = arith.constant dense<0.000000e+00> : vector<8xf32>
    %17 = vector.multi_reduction <add>, %16, %cst_6 [1] : vector<8x32xf32> to vector<8xf32>
    %18 = vector.shape_cast %17 : vector<8xf32> to vector<8x1xf32>
    %19 = arith.addf %3, %9 : vector<8x1xf32>
    %20 = arith.subf %19, %18 : vector<8x1xf32>
    %c8_i32 = arith.constant 8 : i32
    %21 = arith.muli %arg0, %c8_i32 : i32
    %22 = tpu.iota {dimensions = array<i32: 0>} : vector<8x1xi32>
    %23 = vector.broadcast %21 : i32 to vector<8x1xi32>
    %24 = arith.addi %23, %22 : vector<8x1xi32>
    %c20_i32 = arith.constant 20 : i32
    %25 = vector.broadcast %c20_i32 : i32 to vector<8x1xi32>
    %26 = arith.cmpi slt, %24, %25 : vector<8x1xi32>
    %cst_7 = arith.constant 0.000000e+00 : f32
    %27 = vector.broadcast %cst_7 : f32 to vector<8x1xf32>
    %28 = arith.select %26, %20, %27 : vector<8x1xi1>, vector<8x1xf32>
    %cst_8 = arith.constant dense<0.000000e+00> : vector<1xf32>
    %29 = vector.multi_reduction <add>, %28, %cst_8 [0] : vector<8x1xf32> to vector<1xf32>
    %30 = vector.shape_cast %29 : vector<1xf32> to vector<1x1xf32>
    %31 = vector.shape_cast %30 : vector<1x1xf32> to vector<1x1x1xf32>
    %32 = vector.shape_cast %31 : vector<1x1x1xf32> to vector<1x1x1xf32>
    %33 = vector.broadcast %32 : vector<1x1x1xf32> to vector<1x8x128xf32>
    %c0_9 = arith.constant 0 : index
    %c0_10 = arith.constant 0 : index
    %c0_11 = arith.constant 0 : index
    %34 = vector.load %arg3[%c0_9, %c0_10, %c0_11] : memref<1x8x128xf32, #tpu.memory_space<vmem>>, vector<1x8x128xf32>
    tpu.vector_store %arg3[%c0_9, %c0_10, %c0_11], %33 {strides = array<i32>} : memref<1x8x128xf32, #tpu.memory_space<vmem>>, vector<1x8x128xf32>,
    return
  }
  func.func @transform_0(%arg0: i32) -> (i32, i32) {
    %c0_i32 = arith.constant 0 : i32
    %c0_i32_0 = arith.constant 0 : i32
    return %arg0, %c0_i32 : i32, i32
  }
  func.func @transform_1(%arg0: i32) -> (i32, i32) {
    %c0_i32 = arith.constant 0 : i32
    %c0_i32_0 = arith.constant 0 : i32
    return %arg0, %c0_i32 : i32, i32
  }
  func.func @transform_2(%arg0: i32) -> (i32, i32, i32) {
    %c0_i32 = arith.constant 0 : i32
    %c0_i32_0 = arith.constant 0 : i32
    %c0_i32_1 = arith.constant 0 : i32
    return %arg0, %c0_i32, %c0_i32_0 : i32, i32, i32
  }
}

</mosaic_0001>

<llo_original>
// kernel: tpu_custom_call.1
$region0: #{tpu_custom_call.1}
  #allocation0 [shape = 'u32[]', space=smem, size = 0x4, offset = 0x4, fixed_abs, tag = 'smem constant byte address 0x4 - core index']
  #allocation1 [shape = 'u32[144,128]{1,0:T(1,128)}', space=vmem, size = 0x12000, scoped, tag = 'internal scratch']
  %s0 = inlined_call_operand.vmem [shape: f32[20,32], index: 0, kind: input, shape index: {}]
  %s1 = inlined_call_operand.vmem [shape: s32[20,1], index: 1, kind: input, shape index: {}]
  %s2 = inlined_call_operand.hbm [shape: f32[3,8,128], index: 2, kind: output, shape index: {}]
  %s3 = sld [smem:[#allocation0]]
  $region41: #{tpu_custom_call.1} parent=0
    _
  %s5 = ssub.s32 1, %s3
  %s6 = scalar_select 0, %s5, %s3
  $region1: #{tpu_custom_call.1} parent=0
    #allocation2 [shape = 'u8[8192]{0}', space=vmem, size = 0x2000, scoped, tag = 'output window, operand 0']
    #allocation3 [shape = 's32[2]{0}', space=sflag, size = 0x8, scoped, tag = 'scoped memory for tpu_custom_call.1']
    %7 = vsyncpa [#allocation3], 0
    %s8 = scalar_lea.sflag [#allocation3], 1
    %9 = vsyncpa %s8, 0
    loop: start=0, step=1, limit=5
    $region2: #{tpu_custom_call.1} parent=1 // loop_pre_header
      _
    $region3: #{tpu_custom_call.1} parent=1 // loop_header
      %s11 = sphi 0, %s15
      %p12 = scmp.ge.s32.totalorder %s11, 5
      %s21 = sphi 0, %s23
      %s24 = sphi 0, %s21
      %s25 = sphi 0, %s24
      %s41 = sphi 0, %s25
      %s47 = sphi 0, %s49
      %s50 = sphi 0, %s47
      %s51 = sphi 0, %s50
      %s67 = sphi 0, %s51
      %s73 = sphi 0, %s75
      %s76 = sphi 0, %s73
      %s77 = sphi 0, %s76
      %s93 = sphi 0, %s77
    $region4: #{tpu_custom_call.1} parent=1 // loop_header_branch
      %14 = sbr.rel (%p12) target = $region8
    $region5: #{tpu_custom_call.1} parent=1 // loop_body
      %s16 = ssub.s32 %s11, 1
      %s17 = ssub.s32 %s11, 2
      %s18 = sadd.s32 %s11, 1
      %s19 = ssub.s32 %s11, %s18
      %p20 = scmp.eq.s32.totalorder %s19, 0
      %s22 = sadd.s32 %s21, 1
      %s23 = scalar_select %p20, %s21, %s22
      %p26 = pneg %p20
      %p27 = scmp.eq.s32.totalorder %s11, 2
      %p28 = por %p26, %p27
      %p29 = scmp.ne.s32.totalorder %s21, %s24
      %p30 = scmp.eq.s32.totalorder %s11, 0
      %p31 = por %p29, %p30
      %p32 = scmp.ne.s32.totalorder %s21, %s24
      %p33 = scmp.eq.s32.totalorder %s16, 2
      %p34 = por %p32, %p33
      %p35 = scmp.ne.s32.totalorder %s24, %s25
      %p36 = scmp.eq.s32.totalorder %s16, 0
      %p37 = por %p35, %p36
      %p38 = scmp.ne.s32.totalorder %s24, %s25
      %p39 = scmp.eq.s32.totalorder %s17, 2
      %p40 = por %p38, %p39
      %p42 = scmp.ne.s32.totalorder %s25, %s41
      %p43 = scmp.eq.s32.totalorder %s17, 0
      %p44 = por %p42, %p43
      %s45 = ssub.s32 %s11, %s18
      %p46 = scmp.eq.s32.totalorder %s45, 0
      %s48 = sadd.s32 %s47, 1
      %s49 = scalar_select %p46, %s47, %s48
      %p52 = pneg %p46
      %p53 = scmp.eq.s32.totalorder %s11, 2
      %p54 = por %p52, %p53
      %p55 = scmp.ne.s32.totalorder %s47, %s50
      %p56 = scmp.eq.s32.totalorder %s11, 0
      %p57 = por %p55, %p56
      %p58 = scmp.ne.s32.totalorder %s47, %s50
      %p59 = scmp.eq.s32.totalorder %s16, 2
      %p60 = por %p58, %p59
      %p61 = scmp.ne.s32.totalorder %s50, %s51
      %p62 = scmp.eq.s32.totalorder %s16, 0
      %p63 = por %p61, %p62
      %p64 = scmp.ne.s32.totalorder %s50, %s51
      %p65 = scmp.eq.s32.totalorder %s17, 2
      %p66 = por %p64, %p65
      %p68 = scmp.ne.s32.totalorder %s51, %s67
      %p69 = scmp.eq.s32.totalorder %s17, 0
      %p70 = por %p68, %p69
      %s71 = ssub.s32 %s11, %s18
      %p72 = scmp.eq.s32.totalorder %s71, 0
      %s74 = sadd.s32 %s73, 1
      %s75 = scalar_select %p72, %s73, %s74
      %p78 = pneg %p72
      %p79 = scmp.eq.s32.totalorder %s11, 2
      %p80 = por %p78, %p79
      %p81 = scmp.ne.s32.totalorder %s73, %s76
      %p82 = scmp.eq.s32.totalorder %s11, 0
      %p83 = por %p81, %p82
      %p84 = scmp.ne.s32.totalorder %s73, %s76
      %p85 = scmp.eq.s32.totalorder %s16, 2
      %p86 = por %p84, %p85
      %p87 = scmp.ne.s32.totalorder %s76, %s77
      %p88 = scmp.eq.s32.totalorder %s16, 0
      %p89 = por %p87, %p88
      %p90 = scmp.ne.s32.totalorder %s76, %s77
      %p91 = scmp.eq.s32.totalorder %s17, 2
      %p92 = por %p90, %p91
      %p94 = scmp.ne.s32.totalorder %s77, %s93
      %p95 = scmp.eq.s32.totalorder %s17, 0
      %p96 = por %p94, %p95
      %p97 = scmp.le.s32.totalorder 1, %s11
      %p98 = scmp.lt.s32.totalorder %s11, 4
      %p99 = pnand %p97, %p98
      %p100 = pneg %p99
      // Predicated region
      $region9: #{tpu_custom_call.1} parent=5 // pred_check
        _
      $region10: #{tpu_custom_call.1} parent=5 // pred_check_branch
        %102 = sbr.rel (%p99) target = $region12
      $region11: #{tpu_custom_call.1} parent=5 // pred_region
        %s103 = ssub.s32 %s11, 1
      $region12: #{tpu_custom_call.1} parent=5 // pred_fallthru
        _
      %p104 = scmp.lt.s32.totalorder %s11, 3
      // Predicated region
      $region13: #{tpu_custom_call.1} parent=5 // pred_check
        %p105 = pneg %p104
      $region14: #{tpu_custom_call.1} parent=5 // pred_check_branch
        %107 = sbr.rel (%p105) target = $region16
      $region15: #{tpu_custom_call.1} parent=5 // pred_region
        // Predicated region
        $region17: #{tpu_custom_call.1} parent=15 // pred_check
          %p108 = pneg %p31
        $region18: #{tpu_custom_call.1} parent=15 // pred_check_branch
          %110 = sbr.rel (%p108) target = $region20
        $region19: #{tpu_custom_call.1} parent=15 // pred_region
          %p111 = scmp.lt.s32.totalorder %s11, 2
          %s112 = scalar_select %p111, %s11, 2
          %s113 = smul.addr %s112, 8
          %s114 = scalar_lea.vmem %s0, %s113
        $region20: #{tpu_custom_call.1} parent=15 // pred_fallthru
          _
        // Predicated region
        $region21: #{tpu_custom_call.1} parent=15 // pred_check
          %p115 = pneg %p57
        $region22: #{tpu_custom_call.1} parent=15 // pred_check_branch
          %117 = sbr.rel (%p115) target = $region24
        $region23: #{tpu_custom_call.1} parent=15 // pred_region
          %p118 = scmp.lt.s32.totalorder %s11, 2
          %s119 = scalar_select %p118, %s11, 2
          %s120 = smul.addr %s119, 8
          %s121 = scalar_lea.vmem %s1, %s120
        $region24: #{tpu_custom_call.1} parent=15 // pred_fallthru
          _
      $region16: #{tpu_custom_call.1} parent=5 // pred_fallthru
        _
      %p122 = scmp.le.s32.totalorder 1, %s11
      %p123 = scmp.lt.s32.totalorder %s11, 4
      %p124 = pnand %p122, %p123
      %p125 = pneg %p124
      // Predicated region
      $region25: #{tpu_custom_call.1} parent=5 // pred_check
        _
      $region26: #{tpu_custom_call.1} parent=5 // pred_check_branch
        %127 = sbr.rel (%p124) target = $region28
      $region27: #{tpu_custom_call.1} parent=5 // pred_region
        %s128 = ssub.s32 %s11, 1
        %p129 = scmp.lt.s32.totalorder %s16, 2
        %s130 = scalar_select %p129, %s16, 2
        %s131 = smul.addr %s130, 8
        %s132 = scalar_lea.vmem %s0, %s131
        %p133 = pneg %p37
        %p134 = pneg %p34
        %p135 = scmp.lt.s32.totalorder %s16, 2
        %s136 = scalar_select %p135, %s16, 2
        %s137 = smul.addr %s136, 8
        %s138 = scalar_lea.vmem %s1, %s137
        %p139 = pneg %p63
        %p140 = pneg %p60
        %p141 = pneg %p89
        %p142 = pneg %p86
        %s143 = sand.u32 %s76, 1
        %s144 = scalar_lea.sflag [#allocation3], %s143
        %s145 = sand.u32 %s76, 1
        %s146 = smul.addr %s145, 8
        %s147 = scalar_lea.vmem [#allocation2], %s146
        %p148 = scmp.lt.s32.totalorder %s16, 2
        %s149 = scalar_select %p148, %s16, 2
        %s150 = smul.addr %s149, 8
        %s151 = scalar_lea.vmem %s0, %s150
        %p152 = scmp.lt.s32.totalorder %s16, 2
        %s153 = scalar_select %p152, %s16, 2
        %s154 = smul.addr %s153, 8
        %s155 = scalar_lea.vmem %s1, %s154
        %v156 = vld [vmem:[%s151] sm:$0xff]
        %v157 = vld [vmem:[%s155] sm:$0xff]
        %vm158 = vcmask 261120
        %v159 = vsel %vm158, %v156, -inf
        %160 = vmax.xlane.f32.xlu0 %v159
        %v161 = vpop.xlane.xlu0 %160
        %v162 = vsub.f32 %v156, %v161
        %v163 = vmul.f32 %v162, 1.442695
        %v164 = vpow.pop %v163
        %v165 = vsel %vm158, %v164, 0.0
        %166 = vadd.xlane.f32.xlu0 %v165
        %v167 = vpop.xlane.xlu0 %166
        %v168 = vlog2.pop %v167
        %v169 = vmul.f32 %v168, 0.6931472
        %v170 = vlaneseq
        %v171 = vand.u32 %v170, 127
        %172 = vset.pattern.permute.xlu0 0
        %173 = vperm.xlu0 %172, %v157
        %v174 = vpop.permute.xlu0 %173
        %vm175 = vcmp.eq.s32.totalorder %v171, %v174
        %v176 = vsel %vm175, 0.903125, 0.003125
        %v177 = vmul.f32 %v176, %v156
        %v178 = vsel %vm158, %v177, 0.0
        %179 = vadd.xlane.f32.xlu0 %v178
        %v180 = vpop.xlane.xlu0 %179
        %v181 = vadd.f32 %v161, %v169
        %v182 = vsub.f32 %v181, %v180
        %s183 = smul.u32 %s16, 8
        %v184 = vlaneseq
        %v185 = vshrl.u32 %v184, 7
        %v186 = vstv %s183
        %v187 = vadd.s32 %v186, %v185
        %vm188 = vcmp.lt.s32.totalorder %v187, 20
        %v189 = vsel %vm188, %v182, 0.0
        %v190 = vrot.slane %v189, 4
        %v191 = vadd.f32 %v189, %v190
        %v192 = vrot.slane %v191, 2
        %v193 = vadd.f32 %v191, %v192
        %v194 = vrot.slane %v193, 1
        %v195 = vadd.f32 %v193, %v194
        %196 = vst [vmem:[%s147] sm:$0xff] %v195
        %s197 = sand.u32 %s76, 1
        %s198 = scalar_lea.sflag [#allocation3], %s197
        %s199 = sand.u32 %s76, 1
        %s200 = smul.addr %s199, 8
        %s201 = scalar_lea.vmem [#allocation2], %s200
        // Predicated region
        $region29: #{tpu_custom_call.1} parent=27 // pred_check
          %p202 = pneg %p86
        $region30: #{tpu_custom_call.1} parent=27 // pred_check_branch
          %204 = sbr.rel (%p202) target = $region32
        $region31: #{tpu_custom_call.1} parent=27 // pred_region
          %s206 = ssub.s32 128, 128
          %207 = vsyncadd %s198, %s206
          %s208 = smul.addr %s16, 128
          %s209 = scalar_lea.hbm %s2, %s208
          %s211 = sshll.u32 %s201, 4
          %s212 = int_to_ptr.vmem [resolvable:$true] %s211
          %214 = dma.vmem_to_hbm [thread:$0]  %s212, 128, %s209, %s198
        $region32: #{tpu_custom_call.1} parent=27 // pred_fallthru
          _
      $region28: #{tpu_custom_call.1} parent=5 // pred_fallthru
        _
      %p215 = scmp.le.s32.totalorder 2, %s11
      // Predicated region
      $region33: #{tpu_custom_call.1} parent=5 // pred_check
        %p216 = pneg %p215
      $region34: #{tpu_custom_call.1} parent=5 // pred_check_branch
        %218 = sbr.rel (%p216) target = $region36
      $region35: #{tpu_custom_call.1} parent=5 // pred_region
        %s219 = ssub.s32 %s11, 2
        // Predicated region
        $region37: #{tpu_custom_call.1} parent=35 // pred_check
          %p220 = pneg %p92
        $region38: #{tpu_custom_call.1} parent=35 // pred_check_branch
          %222 = sbr.rel (%p220) target = $region40
        $region39: #{tpu_custom_call.1} parent=35 // pred_region
          %s223 = sand.u32 %s77, 1
          %s224 = scalar_lea.sflag [#allocation3], %s223
          %s225 = sand.u32 %s77, 1
          %s226 = smul.addr %s225, 8
          %s227 = scalar_lea.vmem [#allocation2], %s226
          %228 = dma.done %s224, 128
        $region40: #{tpu_custom_call.1} parent=35 // pred_fallthru
          _
      $region36: #{tpu_custom_call.1} parent=5 // pred_fallthru
        _
    $region6: #{tpu_custom_call.1} parent=1 // loop_footer
      %s15 = sadd.s32 1, %s11
    $region7: #{tpu_custom_call.1} parent=1 // loop_footer_branch
      %10 = sbr.rel target = $region3
    $region8: #{tpu_custom_call.1} parent=1 // loop_exit
      _
    %229 = vsyncpa [#allocation3], 1
    %s230 = scalar_lea.sflag [#allocation3], 1
    %231 = vsyncpa %s230, 1

</llo_original>
